<compile_context>
chip_gen: v6e
topology: v6e:2x2x1
jax: 0.10.0
libtpu: 0.0.40
codegen_flags: <defaults>
</compile_context>

<pallas_src>
import functools

import jax
import jax.numpy as jnp
from jax.experimental import pallas as pl
from jax.experimental.pallas import tpu as pltpu

LN_EPS = 1e-5  # PyTorch nn.LayerNorm default

_TAPS = [(sh, sw) for sh in (-1, 0, 1) for sw in (-1, 0, 1)]


# ---------------------------------------------------------------------------
# Fused kernel: LayerNorm -> conv3x3+SiLU -> conv3x3+SiLU, all samples in one shot.
# ---------------------------------------------------------------------------
def _fused_block_kernel(x_ref, g_ref, bt_ref, mask_ref, w1_ref, b1_ref, w2_ref, b2_ref,
                        o_ref, *, H, W, n_samples, n_real):
    """Activations are carried lane-dense as (C, N*HW) float32.

    x_ref   : (N, Cp, HW)     input (channels zero-padded to Cp)
    g_ref   : (Cp, HW)        LayerNorm gamma (padded rows 0)
    bt_ref  : (Cp, HW)        LayerNorm beta  (padded rows 0)
    mask_ref: (9, N*HW)       precomputed 0/1 tap-validity masks (shared by both convs)
    w1_ref  : (Cout, 9*Cp)    conv1 weights, bf16, column = (tap*Cp + ci)
    b1_ref  : (Cout, 1)       conv1 bias, f32
    w2_ref  : (Cout, 9*Cout)  conv2 weights, bf16
    b2_ref  : (Cout, 1)       conv2 bias, f32
    o_ref   : (N, Cout, HW)   output (NCHW-flattened)
    """
    HW = H * W
    L = n_samples * HW

    g = g_ref[...]
    bt = bt_ref[...]

    # ---- per-sample LayerNorm over (C, H, W); affine folded into scale/shift ----
    # Single-pass E[x^2]-mean^2 is exact w.r.t. the zero padded rows (they add 0 to both
    # sums); adequate for ~unit-scale inputs.
    acts = []
    for n in range(n_samples):
        xn = x_ref[n].astype(jnp.float32)                # (Cp, HW); padded rows are 0
        s = jnp.sum(xn)
        ss = jnp.sum(xn * xn)
        mean = s / n_real
        var = ss / n_real - mean * mean
        inv = jax.lax.rsqrt(var + LN_EPS)
        scale = g * inv                                  # gamma * inv_std
        shift = bt - mean * scale
        acts.append(xn * scale + shift)                  # padded rows stay exactly 0
    act = jnp.concatenate(acts, axis=1) if n_samples > 1 else acts[0]   # (Cp, L)

    mask = mask_ref[...]                                 # (9, L) 0/1 f32, loaded once

    def conv3x3_silu(a, w_bf16, bias):
        # im2col kept entirely in registers: 9 masked/rolled planes -> one MXU matmul.
        planes = []
        for t, (sh, sw) in enumerate(_TAPS):
            d = sh * W + sw                              # flat-index offset of this tap
            r = (-d) % L
            shifted = a if r == 0 else pltpu.roll(a, shift=r, axis=1)
            planes.append(shifted * mask[t:t + 1, :])    # zero invalid / wrapped lanes
        pat = jnp.concatenate(planes, axis=0).astype(jnp.bfloat16)   # (9*cg, L)
        y = jnp.dot(w_bf16, pat, preferred_element_type=jnp.float32) + bias
        return y * jax.nn.sigmoid(y)                     # SiLU

    h1 = conv3x3_silu(act, w1_ref[...], b1_ref[...])     # (Cout, L)
    h2 = conv3x3_silu(h1, w2_ref[...], b2_ref[...])      # (Cout, L)

    for n in range(n_samples):                           # lane-tile-aligned static slices
        o_ref[n] = h2[:, n * HW:(n + 1) * HW].astype(o_ref.dtype)


# ---------------------------------------------------------------------------
# One-time parameter prep (hoisted out of the per-call path).
# ---------------------------------------------------------------------------
def _round_up(v, m):
    return -(-v // m) * m


def prepare_params(params, *, N, H, W):
    """Pad / reshape parameters and build the tap-validity masks ONCE."""
    gamma, beta = params["ln_gamma"], params["ln_beta"]
    w1, b1, w2, b2 = params["w1"], params["b1"], params["w2"], params["b2"]
    HW = H * W
    Cin, Cout = w1.shape[2], w1.shape[3]
    assert Cout % 8 == 0, "Cout must be a multiple of 8 for this kernel"
    cp = _round_up(max(Cin, 8), 8)

    g_p = jnp.pad(gamma.reshape(Cin, HW).astype(jnp.float32), ((0, cp - Cin), (0, 0)))
    bt_p = jnp.pad(beta.reshape(Cin, HW).astype(jnp.float32), ((0, cp - Cin), (0, 0)))

    # im2col weight matrices (bf16 for the MXU): column index = (kh*3+kw)*C + ci.
    w1_p = jnp.pad(w1, ((0, 0), (0, 0), (0, cp - Cin), (0, 0)))          # (3,3,Cp,Cout)
    w1m = jnp.transpose(w1_p, (3, 0, 1, 2)).reshape(Cout, 9 * cp).astype(jnp.bfloat16)
    w2m = jnp.transpose(w2, (3, 0, 1, 2)).reshape(Cout, 9 * Cout).astype(jnp.bfloat16)
    b1c = b1.reshape(Cout, 1).astype(jnp.float32)
    b2c = b2.reshape(Cout, 1).astype(jnp.float32)

    # Precomputed tap-validity masks over the batch-folded lane axis (9, N*HW).
    lane = jnp.arange(N * HW)
    hh = (lane % HW) // W
    ww = lane % W
    rows = []
    for sh, sw in _TAPS:
        rows.append((hh + sh >= 0) & (hh + sh < H) & (ww + sw >= 0) & (ww + sw < W))
    mask = jnp.stack(rows, axis=0).astype(jnp.float32)

    return {"g": g_p, "bt": bt_p, "mask": mask,
            "w1": w1m, "b1": b1c, "w2": w2m, "b2": b2c}


# ---------------------------------------------------------------------------
# Forward wrapper (single pallas_call, no grid).
# ---------------------------------------------------------------------------
@functools.partial(jax.jit, static_argnames=("H", "W"))
def my_block_forward(x_nchw, prepped, *, H, W):
    N, Cin, _, _ = x_nchw.shape
    HW = H * W
    Cp = prepped["g"].shape[0]
    Cout = prepped["w1"].shape[0]

    # Per-call activation prep: flatten spatial + pad channels to the sublane tile.
    x_flat = x_nchw.reshape(N, Cin, HW)
    x_p = jnp.pad(x_flat, ((0, 0), (0, Cp - Cin), (0, 0)))

    kernel = functools.partial(_fused_block_kernel, H=H, W=W, n_samples=N,
                               n_real=float(Cin * HW))

    out_flat = pl.pallas_call(
        kernel,
        out_shape=jax.ShapeDtypeStruct((N, Cout, HW), x_nchw.dtype),
        in_specs=[pl.BlockSpec(memory_space=pltpu.MemorySpace.VMEM)] * 8,
        out_specs=pl.BlockSpec(memory_space=pltpu.MemorySpace.VMEM),
    )(x_p, prepped["g"], prepped["bt"], prepped["mask"],
      prepped["w1"], prepped["b1"], prepped["w2"], prepped["b2"])

    # Already channels-first, flattened spatial — reshape is free.
    return out_flat.reshape(N, Cout, H, W)


# ---------------------------------------------------------------------------
# Pure-JAX reference (for a sanity check)
# ---------------------------------------------------------------------------
def ref_forward(x_nchw, params):
    gamma, beta, w1, b1, w2, b2 = (
        params["ln_gamma"], params["ln_beta"],
        params["w1"], params["b1"], params["w2"], params["b2"],
    )
    mean = jnp.mean(x_nchw, axis=(1, 2, 3), keepdims=True)
    var = jnp.mean((x_nchw - mean) ** 2, axis=(1, 2, 3), keepdims=True)
    out = (x_nchw - mean) * jax.lax.rsqrt(var + LN_EPS)
    out = out * gamma[None] + beta[None]

    def conv(y, w, b):
        z = jax.lax.conv_general_dilated(
            y, w, window_strides=(1, 1), padding=((1, 1), (1, 1)),
            dimension_numbers=("NCHW", "HWIO", "NCHW"))
        z = z + b.reshape(1, -1, 1, 1)
        return z * jax.nn.sigmoid(z)

    out = conv(out, w1, b1)
    out = conv(out, w2, b2)
    return out


# ---------------------------------------------------------------------------
# Main
# ---------------------------------------------------------------------------
if __name__ == "__main__":
    N, IN_C, OUT_C, H, W = 2, 4, 8, 16, 16

    key = jax.random.PRNGKey(0)
    k_x, k_g, k_b, k_w1, k_b1, k_w2, k_b2 = jax.random.split(key, 7)

    x = jax.random.normal(k_x, (N, IN_C, H, W), dtype=jnp.float32)

    params = {
        # nn.LayerNorm([in_c, H, W]) -> elementwise affine of shape (C, H, W)
        "ln_gamma": 1.0 + 0.05 * jax.random.normal(k_g, (IN_C, H, W), jnp.float32),
        "ln_beta": 0.05 * jax.random.normal(k_b, (IN_C, H, W), jnp.float32),
        # Conv weights stored HWIO: (kH, kW, Cin, Cout)
        "w1": 0.2 * jax.random.normal(k_w1, (3, 3, IN_C, OUT_C), jnp.float32),
        "b1": 0.1 * jax.random.normal(k_b1, (OUT_C,), jnp.float32),
        "w2": 0.2 * jax.random.normal(k_w2, (3, 3, OUT_C, OUT_C), jnp.float32),
        "b2": 0.1 * jax.random.normal(k_b2, (OUT_C,), jnp.float32),
    }

    prepped = prepare_params(params, N=N, H=H, W=W)   # one-time prep (hoisted)
    prepped = jax.tree_util.tree_map(jax.block_until_ready, prepped)

    out = my_block_forward(x, prepped, H=H, W=W)
    out = jax.block_until_ready(out)

    expected = jax.block_until_ready(ref_forward(x, params))
    assert out.shape == (N, OUT_C, H, W), out.shape
    # Tolerance accounts for bf16 MXU operands (f32 accumulation) vs. the f32 reference.
    assert jnp.allclose(out, expected, rtol=2e-2, atol=3e-2), (
        float(jnp.max(jnp.abs(out - expected))))

    print("KERNEL_OK")
</pallas_src>

<mosaic_0001>
module attributes {stable_mosaic.version = 11 : i64} {
  func.func @_fused_block_kernel(%arg0: memref<2x8x256xf32, #tpu.memory_space<vmem>>, %arg1: memref<8x256xf32, #tpu.memory_space<vmem>>, %arg2: memref<8x256xf32, #tpu.memory_space<vmem>>, %arg3: memref<9x512xf32, #tpu.memory_space<vmem>>, %arg4: memref<8x72xbf16, #tpu.memory_space<vmem>>, %arg5: memref<8x1xf32, #tpu.memory_space<vmem>>, %arg6: memref<8x72xbf16, #tpu.memory_space<vmem>>, %arg7: memref<8x1xf32, #tpu.memory_space<vmem>>, %arg8: memref<2x8x256xf32, #tpu.memory_space<vmem>>) attributes {dimension_semantics = [], scalar_prefetch = 0 : i64, scratch_operands = 0 : i64, tpu.core_type = #tpu.core_type<tc>} {
    %c0 = arith.constant 0 : index
    %c0_0 = arith.constant 0 : index
    %0 = vector.load %arg1[%c0, %c0_0] : memref<8x256xf32, #tpu.memory_space<vmem>>, vector<8x256xf32>
    %c0_1 = arith.constant 0 : index
    %c0_2 = arith.constant 0 : index
    %1 = vector.load %arg2[%c0_1, %c0_2] : memref<8x256xf32, #tpu.memory_space<vmem>>, vector<8x256xf32>
    %c0_3 = arith.constant 0 : index
    %c0_4 = arith.constant 0 : index
    %c0_5 = arith.constant 0 : index
    %2 = vector.load %arg0[%c0_3, %c0_4, %c0_5] : memref<2x8x256xf32, #tpu.memory_space<vmem>>, vector<1x8x256xf32>
    %3 = vector.shape_cast %2 : vector<1x8x256xf32> to vector<8x256xf32>
    %4 = vector.shape_cast %3 : vector<8x256xf32> to vector<1x8x256xf32>
    %cst = arith.constant dense<0.000000e+00> : vector<1xf32>
    %5 = vector.multi_reduction <add>, %4, %cst [1, 2] : vector<1x8x256xf32> to vector<1xf32>
    %6 = vector.shape_cast %5 : vector<1xf32> to vector<1x1x1xf32>
    %7 = vector.extract %6[0, 0, 0] : f32 from vector<1x1x1xf32>
    %8 = arith.mulf %3, %3 : vector<8x256xf32>
    %9 = vector.shape_cast %8 : vector<8x256xf32> to vector<1x8x256xf32>
    %cst_6 = arith.constant dense<0.000000e+00> : vector<1xf32>
    %10 = vector.multi_reduction <add>, %9, %cst_6 [1, 2] : vector<1x8x256xf32> to vector<1xf32>
    %11 = vector.shape_cast %10 : vector<1xf32> to vector<1x1x1xf32>
    %12 = vector.extract %11[0, 0, 0] : f32 from vector<1x1x1xf32>
    %cst_7 = arith.constant 1.024000e+03 : f32
    %13 = arith.divf %7, %cst_7 : f32
    %cst_8 = arith.constant 1.024000e+03 : f32
    %14 = arith.divf %12, %cst_8 : f32
    %15 = arith.mulf %13, %13 : f32
    %16 = arith.subf %14, %15 : f32
    %cst_9 = arith.constant 9.99999974E-6 : f32
    %17 = arith.addf %16, %cst_9 : f32
    %18 = math.rsqrt %17 : f32
    %19 = vector.broadcast %18 : f32 to vector<8x256xf32>
    %20 = arith.mulf %0, %19 : vector<8x256xf32>
    %21 = vector.broadcast %13 : f32 to vector<8x256xf32>
    %22 = arith.mulf %21, %20 : vector<8x256xf32>
    %23 = arith.subf %1, %22 : vector<8x256xf32>
    %24 = arith.mulf %3, %20 : vector<8x256xf32>
    %25 = arith.addf %24, %23 : vector<8x256xf32>
    %c1 = arith.constant 1 : index
    %c0_10 = arith.constant 0 : index
    %c0_11 = arith.constant 0 : index
    %26 = vector.load %arg0[%c1, %c0_10, %c0_11] : memref<2x8x256xf32, #tpu.memory_space<vmem>>, vector<1x8x256xf32>
    %27 = vector.shape_cast %26 : vector<1x8x256xf32> to vector<8x256xf32>
    %28 = vector.shape_cast %27 : vector<8x256xf32> to vector<1x8x256xf32>
    %cst_12 = arith.constant dense<0.000000e+00> : vector<1xf32>
    %29 = vector.multi_reduction <add>, %28, %cst_12 [1, 2] : vector<1x8x256xf32> to vector<1xf32>
    %30 = vector.shape_cast %29 : vector<1xf32> to vector<1x1x1xf32>
    %31 = vector.extract %30[0, 0, 0] : f32 from vector<1x1x1xf32>
    %32 = arith.mulf %27, %27 : vector<8x256xf32>
    %33 = vector.shape_cast %32 : vector<8x256xf32> to vector<1x8x256xf32>
    %cst_13 = arith.constant dense<0.000000e+00> : vector<1xf32>
    %34 = vector.multi_reduction <add>, %33, %cst_13 [1, 2] : vector<1x8x256xf32> to vector<1xf32>
    %35 = vector.shape_cast %34 : vector<1xf32> to vector<1x1x1xf32>
    %36 = vector.extract %35[0, 0, 0] : f32 from vector<1x1x1xf32>
    %cst_14 = arith.constant 1.024000e+03 : f32
    %37 = arith.divf %31, %cst_14 : f32
    %cst_15 = arith.constant 1.024000e+03 : f32
    %38 = arith.divf %36, %cst_15 : f32
    %39 = arith.mulf %37, %37 : f32
    %40 = arith.subf %38, %39 : f32
    %cst_16 = arith.constant 9.99999974E-6 : f32
    %41 = arith.addf %40, %cst_16 : f32
    %42 = math.rsqrt %41 : f32
    %43 = vector.broadcast %42 : f32 to vector<8x256xf32>
    %44 = arith.mulf %0, %43 : vector<8x256xf32>
    %45 = vector.broadcast %37 : f32 to vector<8x256xf32>
    %46 = arith.mulf %45, %44 : vector<8x256xf32>
    %47 = arith.subf %1, %46 : vector<8x256xf32>
    %48 = arith.mulf %27, %44 : vector<8x256xf32>
    %49 = arith.addf %48, %47 : vector<8x256xf32>
    %50 = tpu.concatenate %25, %49 in 1 : vector<8x256xf32>, vector<8x256xf32> -> vector<8x512xf32>
    %c0_17 = arith.constant 0 : index
    %c0_18 = arith.constant 0 : index
    %51 = vector.load %arg3[%c0_17, %c0_18] : memref<9x512xf32, #tpu.memory_space<vmem>>, vector<9x512xf32>
    %c0_19 = arith.constant 0 : index
    %c0_20 = arith.constant 0 : index
    %52 = vector.load %arg4[%c0_19, %c0_20] : memref<8x72xbf16, #tpu.memory_space<vmem>>, vector<8x72xbf16>
    %c0_21 = arith.constant 0 : index
    %c0_22 = arith.constant 0 : index
    %53 = vector.load %arg5[%c0_21, %c0_22] : memref<8x1xf32, #tpu.memory_space<vmem>>, vector<8x1xf32>
    %c17_i32 = arith.constant 17 : i32
    %54 = tpu.dynamic_rotate %50 by %c17_i32 dim 1 : vector<8x512xf32>, i32 -> vector<8x512xf32>
    %55 = vector.extract_strided_slice %51 {offsets = [0, 0], sizes = [1, 512], strides = [1, 1]} : vector<9x512xf32> to vector<1x512xf32>
    %56 = vector.broadcast %55 : vector<1x512xf32> to vector<8x512xf32>
    %57 = arith.mulf %54, %56 : vector<8x512xf32>
    %c16_i32 = arith.constant 16 : i32
    %58 = tpu.dynamic_rotate %50 by %c16_i32 dim 1 : vector<8x512xf32>, i32 -> vector<8x512xf32>
    %59 = vector.extract_strided_slice %51 {offsets = [1, 0], sizes = [1, 512], strides = [1, 1]} : vector<9x512xf32> to vector<1x512xf32>
    %60 = vector.broadcast %59 : vector<1x512xf32> to vector<8x512xf32>
    %61 = arith.mulf %58, %60 : vector<8x512xf32>
    %c15_i32 = arith.constant 15 : i32
    %62 = tpu.dynamic_rotate %50 by %c15_i32 dim 1 : vector<8x512xf32>, i32 -> vector<8x512xf32>
    %63 = vector.extract_strided_slice %51 {offsets = [2, 0], sizes = [1, 512], strides = [1, 1]} : vector<9x512xf32> to vector<1x512xf32>
    %64 = vector.broadcast %63 : vector<1x512xf32> to vector<8x512xf32>
    %65 = arith.mulf %62, %64 : vector<8x512xf32>
    %c1_i32 = arith.constant 1 : i32
    %66 = tpu.dynamic_rotate %50 by %c1_i32 dim 1 : vector<8x512xf32>, i32 -> vector<8x512xf32>
    %67 = vector.extract_strided_slice %51 {offsets = [3, 0], sizes = [1, 512], strides = [1, 1]} : vector<9x512xf32> to vector<1x512xf32>
    %68 = vector.broadcast %67 : vector<1x512xf32> to vector<8x512xf32>
    %69 = arith.mulf %66, %68 : vector<8x512xf32>
    %70 = vector.extract_strided_slice %51 {offsets = [4, 0], sizes = [1, 512], strides = [1, 1]} : vector<9x512xf32> to vector<1x512xf32>
    %71 = vector.broadcast %70 : vector<1x512xf32> to vector<8x512xf32>
    %72 = arith.mulf %50, %71 : vector<8x512xf32>
    %c511_i32 = arith.constant 511 : i32
    %73 = tpu.dynamic_rotate %50 by %c511_i32 dim 1 : vector<8x512xf32>, i32 -> vector<8x512xf32>
    %74 = vector.extract_strided_slice %51 {offsets = [5, 0], sizes = [1, 512], strides = [1, 1]} : vector<9x512xf32> to vector<1x512xf32>
    %75 = vector.broadcast %74 : vector<1x512xf32> to vector<8x512xf32>
    %76 = arith.mulf %73, %75 : vector<8x512xf32>
    %c497_i32 = arith.constant 497 : i32
    %77 = tpu.dynamic_rotate %50 by %c497_i32 dim 1 : vector<8x512xf32>, i32 -> vector<8x512xf32>
    %78 = vector.extract_strided_slice %51 {offsets = [6, 0], sizes = [1, 512], strides = [1, 1]} : vector<9x512xf32> to vector<1x512xf32>
    %79 = vector.broadcast %78 : vector<1x512xf32> to vector<8x512xf32>
    %80 = arith.mulf %77, %79 : vector<8x512xf32>
    %c496_i32 = arith.constant 496 : i32
    %81 = tpu.dynamic_rotate %50 by %c496_i32 dim 1 : vector<8x512xf32>, i32 -> vector<8x512xf32>
    %82 = vector.extract_strided_slice %51 {offsets = [7, 0], sizes = [1, 512], strides = [1, 1]} : vector<9x512xf32> to vector<1x512xf32>
    %83 = vector.broadcast %82 : vector<1x512xf32> to vector<8x512xf32>
    %84 = arith.mulf %81, %83 : vector<8x512xf32>
    %c495_i32 = arith.constant 495 : i32
    %85 = tpu.dynamic_rotate %50 by %c495_i32 dim 1 : vector<8x512xf32>, i32 -> vector<8x512xf32>
    %86 = vector.extract_strided_slice %51 {offsets = [8, 0], sizes = [1, 512], strides = [1, 1]} : vector<9x512xf32> to vector<1x512xf32>
    %87 = vector.broadcast %86 : vector<1x512xf32> to vector<8x512xf32>
    %88 = arith.mulf %85, %87 : vector<8x512xf32>
    %89 = tpu.concatenate %57, %61, %65, %69, %72, %76, %80, %84, %88 in 0 : vector<8x512xf32>, vector<8x512xf32>, vector<8x512xf32>, vector<8x512xf32>, vector<8x512xf32>, vector<8x512xf32>, vector<8x512xf32>, vector<8x512xf32>, vector<8x512xf32> -> vector<72x512xf32>
    %90 = arith.truncf %89 : vector<72x512xf32> to vector<72x512xbf16>
    %cst_23 = arith.constant dense<0.000000e+00> : vector<8x512xf32>
    %91 = tpu.matmul %52, %90, %cst_23 {dimension_numbers = #tpu.dot_dimension_numbers<[1], [0], [0], [1], [0, 0, 1, 1], [], []>} : vector<8x72xbf16>, vector<72x512xbf16>, vector<8x512xf32> -> vector<8x512xf32>
    %92 = vector.broadcast %53 : vector<8x1xf32> to vector<8x512xf32>
    %93 = arith.addf %91, %92 : vector<8x512xf32>
    %94 = arith.negf %93 : vector<8x512xf32>
    %95 = math.exp %94 : vector<8x512xf32>
    %cst_24 = arith.constant 1.000000e+00 : f32
    %96 = vector.broadcast %cst_24 : f32 to vector<8x512xf32>
    %97 = arith.addf %96, %95 : vector<8x512xf32>
    %98 = arith.divf %96, %97 : vector<8x512xf32>
    %99 = arith.mulf %93, %98 : vector<8x512xf32>
    %c0_25 = arith.constant 0 : index
    %c0_26 = arith.constant 0 : index
    %100 = vector.load %arg6[%c0_25, %c0_26] : memref<8x72xbf16, #tpu.memory_space<vmem>>, vector<8x72xbf16>
    %c0_27 = arith.constant 0 : index
    %c0_28 = arith.constant 0 : index
    %101 = vector.load %arg7[%c0_27, %c0_28] : memref<8x1xf32, #tpu.memory_space<vmem>>, vector<8x1xf32>
    %c17_i32_29 = arith.constant 17 : i32
    %102 = tpu.dynamic_rotate %99 by %c17_i32_29 dim 1 : vector<8x512xf32>, i32 -> vector<8x512xf32>
    %103 = vector.extract_strided_slice %51 {offsets = [0, 0], sizes = [1, 512], strides = [1, 1]} : vector<9x512xf32> to vector<1x512xf32>
    %104 = vector.broadcast %103 : vector<1x512xf32> to vector<8x512xf32>
    %105 = arith.mulf %102, %104 : vector<8x512xf32>
    %c16_i32_30 = arith.constant 16 : i32
    %106 = tpu.dynamic_rotate %99 by %c16_i32_30 dim 1 : vector<8x512xf32>, i32 -> vector<8x512xf32>
    %107 = vector.extract_strided_slice %51 {offsets = [1, 0], sizes = [1, 512], strides = [1, 1]} : vector<9x512xf32> to vector<1x512xf32>
    %108 = vector.broadcast %107 : vector<1x512xf32> to vector<8x512xf32>
    %109 = arith.mulf %106, %108 : vector<8x512xf32>
    %c15_i32_31 = arith.constant 15 : i32
    %110 = tpu.dynamic_rotate %99 by %c15_i32_31 dim 1 : vector<8x512xf32>, i32 -> vector<8x512xf32>
    %111 = vector.extract_strided_slice %51 {offsets = [2, 0], sizes = [1, 512], strides = [1, 1]} : vector<9x512xf32> to vector<1x512xf32>
    %112 = vector.broadcast %111 : vector<1x512xf32> to vector<8x512xf32>
    %113 = arith.mulf %110, %112 : vector<8x512xf32>
    %c1_i32_32 = arith.constant 1 : i32
    %114 = tpu.dynamic_rotate %99 by %c1_i32_32 dim 1 : vector<8x512xf32>, i32 -> vector<8x512xf32>
    %115 = vector.extract_strided_slice %51 {offsets = [3, 0], sizes = [1, 512], strides = [1, 1]} : vector<9x512xf32> to vector<1x512xf32>
    %116 = vector.broadcast %115 : vector<1x512xf32> to vector<8x512xf32>
    %117 = arith.mulf %114, %116 : vector<8x512xf32>
    %118 = vector.extract_strided_slice %51 {offsets = [4, 0], sizes = [1, 512], strides = [1, 1]} : vector<9x512xf32> to vector<1x512xf32>
    %119 = vector.broadcast %118 : vector<1x512xf32> to vector<8x512xf32>
    %120 = arith.mulf %99, %119 : vector<8x512xf32>
    %c511_i32_33 = arith.constant 511 : i32
    %121 = tpu.dynamic_rotate %99 by %c511_i32_33 dim 1 : vector<8x512xf32>, i32 -> vector<8x512xf32>
    %122 = vector.extract_strided_slice %51 {offsets = [5, 0], sizes = [1, 512], strides = [1, 1]} : vector<9x512xf32> to vector<1x512xf32>
    %123 = vector.broadcast %122 : vector<1x512xf32> to vector<8x512xf32>
    %124 = arith.mulf %121, %123 : vector<8x512xf32>
    %c497_i32_34 = arith.constant 497 : i32
    %125 = tpu.dynamic_rotate %99 by %c497_i32_34 dim 1 : vector<8x512xf32>, i32 -> vector<8x512xf32>
    %126 = vector.extract_strided_slice %51 {offsets = [6, 0], sizes = [1, 512], strides = [1, 1]} : vector<9x512xf32> to vector<1x512xf32>
    %127 = vector.broadcast %126 : vector<1x512xf32> to vector<8x512xf32>
    %128 = arith.mulf %125, %127 : vector<8x512xf32>
    %c496_i32_35 = arith.constant 496 : i32
    %129 = tpu.dynamic_rotate %99 by %c496_i32_35 dim 1 : vector<8x512xf32>, i32 -> vector<8x512xf32>
    %130 = vector.extract_strided_slice %51 {offsets = [7, 0], sizes = [1, 512], strides = [1, 1]} : vector<9x512xf32> to vector<1x512xf32>
    %131 = vector.broadcast %130 : vector<1x512xf32> to vector<8x512xf32>
    %132 = arith.mulf %129, %131 : vector<8x512xf32>
    %c495_i32_36 = arith.constant 495 : i32
    %133 = tpu.dynamic_rotate %99 by %c495_i32_36 dim 1 : vector<8x512xf32>, i32 -> vector<8x512xf32>
    %134 = vector.extract_strided_slice %51 {offsets = [8, 0], sizes = [1, 512], strides = [1, 1]} : vector<9x512xf32> to vector<1x512xf32>
    %135 = vector.broadcast %134 : vector<1x512xf32> to vector<8x512xf32>
    %136 = arith.mulf %133, %135 : vector<8x512xf32>
    %137 = tpu.concatenate %105, %109, %113, %117, %120, %124, %128, %132, %136 in 0 : vector<8x512xf32>, vector<8x512xf32>, vector<8x512xf32>, vector<8x512xf32>, vector<8x512xf32>, vector<8x512xf32>, vector<8x512xf32>, vector<8x512xf32>, vector<8x512xf32> -> vector<72x512xf32>
    %138 = arith.truncf %137 : vector<72x512xf32> to vector<72x512xbf16>
    %cst_37 = arith.constant dense<0.000000e+00> : vector<8x512xf32>
    %139 = tpu.matmul %100, %138, %cst_37 {dimension_numbers = #tpu.dot_dimension_numbers<[1], [0], [0], [1], [0, 0, 1, 1], [], []>} : vector<8x72xbf16>, vector<72x512xbf16>, vector<8x512xf32> -> vector<8x512xf32>
    %140 = vector.broadcast %101 : vector<8x1xf32> to vector<8x512xf32>
    %141 = arith.addf %139, %140 : vector<8x512xf32>
    %142 = arith.negf %141 : vector<8x512xf32>
    %143 = math.exp %142 : vector<8x512xf32>
    %cst_38 = arith.constant 1.000000e+00 : f32
    %144 = vector.broadcast %cst_38 : f32 to vector<8x512xf32>
    %145 = arith.addf %144, %143 : vector<8x512xf32>
    %146 = arith.divf %144, %145 : vector<8x512xf32>
    %147 = arith.mulf %141, %146 : vector<8x512xf32>
    %148 = vector.extract_strided_slice %147 {offsets = [0, 0], sizes = [8, 256], strides = [1, 1]} : vector<8x512xf32> to vector<8x256xf32>
    %c0_39 = arith.constant 0 : index
    %c0_40 = arith.constant 0 : index
    %c0_41 = arith.constant 0 : index
    %149 = vector.load %arg8[%c0_39, %c0_40, %c0_41] : memref<2x8x256xf32, #tpu.memory_space<vmem>>, vector<1x8x256xf32>
    %150 = vector.shape_cast %149 : vector<1x8x256xf32> to vector<8x256xf32>
    %151 = vector.shape_cast %148 : vector<8x256xf32> to vector<1x8x256xf32>
    tpu.vector_store %arg8[%c0_39, %c0_40, %c0_41], %151 {strides = array<i32>} : memref<2x8x256xf32, #tpu.memory_space<vmem>>, vector<1x8x256xf32>,
    %152 = vector.extract_strided_slice %147 {offsets = [0, 256], sizes = [8, 256], strides = [1, 1]} : vector<8x512xf32> to vector<8x256xf32>
    %c1_42 = arith.constant 1 : index
    %c0_43 = arith.constant 0 : index
    %c0_44 = arith.constant 0 : index
    %153 = vector.load %arg8[%c1_42, %c0_43, %c0_44] : memref<2x8x256xf32, #tpu.memory_space<vmem>>, vector<1x8x256xf32>
    %154 = vector.shape_cast %153 : vector<1x8x256xf32> to vector<8x256xf32>
    %155 = vector.shape_cast %152 : vector<8x256xf32> to vector<1x8x256xf32>
    tpu.vector_store %arg8[%c1_42, %c0_43, %c0_44], %155 {strides = array<i32>} : memref<2x8x256xf32, #tpu.memory_space<vmem>>, vector<1x8x256xf32>,
    return
  }
}

</mosaic_0001>

<llo_original>
// kernel: my_block_forward.1
$region0: #{my_block_forward.1}
  #allocation0 [shape = 'u32[]', space=smem, size = 0x4, offset = 0x4, fixed_abs, tag = 'smem constant byte address 0x4 - core index']
  #allocation1 [shape = 'u32[144,128]{1,0:T(1,128)}', space=vmem, size = 0x12000, scoped, tag = 'internal scratch']
  %s0 = inlined_call_operand.vmem [shape: f32[2,8,256], index: 0, kind: input, shape index: {}]
  %s1 = inlined_call_operand.vmem [shape: f32[8,256], index: 1, kind: input, shape index: {}]
  %s2 = inlined_call_operand.vmem [shape: f32[8,256], index: 2, kind: input, shape index: {}]
  %s3 = inlined_call_operand.vmem [shape: f32[9,512], index: 3, kind: input, shape index: {}]
  %s4 = inlined_call_operand.vmem [shape: bf16[8,72], index: 4, kind: input, shape index: {}]
  %s5 = inlined_call_operand.vmem [shape: f32[8,1], index: 5, kind: input, shape index: {}]
  %s6 = inlined_call_operand.vmem [shape: bf16[8,72], index: 6, kind: input, shape index: {}]
  %s7 = inlined_call_operand.vmem [shape: f32[8,1], index: 7, kind: input, shape index: {}]
  %s8 = inlined_call_operand.vmem [shape: f32[2,8,256], index: 8, kind: output, shape index: {}]
  %s9 = sld [smem:[#allocation0]]
  $region42: #{my_block_forward.1} parent=0
    _
  %s11 = ssub.s32 1, %s9
  %s12 = scalar_select 0, %s11, %s9
  // Predicated region
  $region2: #{my_block_forward.1} parent=0 // pred_check
    _
  $region3: #{my_block_forward.1} parent=0 // pred_check_branch
    %14 = sbr.rel (0) target = $region5
  $region4: #{my_block_forward.1} parent=0 // pred_region
    _
  $region5: #{my_block_forward.1} parent=0 // pred_fallthru
    _
  // Predicated region
  $region6: #{my_block_forward.1} parent=0 // pred_check
    _
  $region7: #{my_block_forward.1} parent=0 // pred_check_branch
    %16 = sbr.rel (0) target = $region9
  $region8: #{my_block_forward.1} parent=0 // pred_region
    _
  $region9: #{my_block_forward.1} parent=0 // pred_fallthru
    _
  // Predicated region
  $region10: #{my_block_forward.1} parent=0 // pred_check
    _
  $region11: #{my_block_forward.1} parent=0 // pred_check_branch
    %18 = sbr.rel (0) target = $region13
  $region12: #{my_block_forward.1} parent=0 // pred_region
    _
  $region13: #{my_block_forward.1} parent=0 // pred_fallthru
    _
  // Predicated region
  $region14: #{my_block_forward.1} parent=0 // pred_check
    _
  $region15: #{my_block_forward.1} parent=0 // pred_check_branch
    %20 = sbr.rel (0) target = $region17
  $region16: #{my_block_forward.1} parent=0 // pred_region
    _
  $region17: #{my_block_forward.1} parent=0 // pred_fallthru
    _
  // Predicated region
  $region18: #{my_block_forward.1} parent=0 // pred_check
    _
  $region19: #{my_block_forward.1} parent=0 // pred_check_branch
    %22 = sbr.rel (0) target = $region21
  $region20: #{my_block_forward.1} parent=0 // pred_region
    _
  $region21: #{my_block_forward.1} parent=0 // pred_fallthru
    _
  // Predicated region
  $region22: #{my_block_forward.1} parent=0 // pred_check
    _
  $region23: #{my_block_forward.1} parent=0 // pred_check_branch
    %24 = sbr.rel (0) target = $region25
  $region24: #{my_block_forward.1} parent=0 // pred_region
    _
  $region25: #{my_block_forward.1} parent=0 // pred_fallthru
    _
  // Predicated region
  $region26: #{my_block_forward.1} parent=0 // pred_check
    _
  $region27: #{my_block_forward.1} parent=0 // pred_check_branch
    %26 = sbr.rel (0) target = $region29
  $region28: #{my_block_forward.1} parent=0 // pred_region
    _
  $region29: #{my_block_forward.1} parent=0 // pred_fallthru
    _
  // Predicated region
  $region30: #{my_block_forward.1} parent=0 // pred_check
    _
  $region31: #{my_block_forward.1} parent=0 // pred_check_branch
    %28 = sbr.rel (0) target = $region33
  $region32: #{my_block_forward.1} parent=0 // pred_region
    _
  $region33: #{my_block_forward.1} parent=0 // pred_fallthru
    _
  %v30 = vld [vmem:[%s1] sm:$0xff]
  %v31 = vld [vmem:[%s1 + $0x8] sm:$0xff]
  %v32 = vld [vmem:[%s2] sm:$0xff]
  %v33 = vld [vmem:[%s2 + $0x8] sm:$0xff]
  %v34 = vld [vmem:[%s0] sm:$0xff]
  %v35 = vld [vmem:[%s0 + $0x8] sm:$0xff]
  %v36 = vadd.f32 %v34, %v35
  %37 = vadd.xlane.f32.xlu0 %v36
  %v38 = vpop.xlane.xlu0 %37
  %v39 = vrot.slane %v38, 4
  %v40 = vadd.f32 %v38, %v39
  %v41 = vrot.slane %v40, 2
  %v42 = vadd.f32 %v40, %v41
  %v43 = vrot.slane %v42, 1
  %v44 = vadd.f32 %v42, %v43
  %s45 = vtos %v44
  %v46 = vmul.f32 %v34, %v34
  %v47 = vmul.f32 %v35, %v35
  %v48 = vadd.f32 %v46, %v47
  %49 = vadd.xlane.f32.xlu0 %v48
  %v50 = vpop.xlane.xlu0 %49
  %v51 = vrot.slane %v50, 4
  %v52 = vadd.f32 %v50, %v51
  %v53 = vrot.slane %v52, 2
  %v54 = vadd.f32 %v52, %v53
  %v55 = vrot.slane %v54, 1
  %v56 = vadd.f32 %v54, %v55
  %s57 = vtos %v56
  %v58 = vrcp.pop 1024.0
  %s59 = vtos %v58
  %s60 = smul.f32 %s45, %s59
  %v61 = vrcp.pop 1024.0
  %s62 = vtos %v61
  %s63 = smul.f32 %s57, %s62
  %s64 = smul.f32 %s60, %s60
  %s65 = ssub.f32 %s63, %s64
  %s66 = sadd.f32 %s65, 1e-05
  %v67 = vstv %s66
  %v68 = vrsqrt.pop %v67
  %s69 = vtos %v68
  %v70 = vstv %s69
  %v71 = vmul.f32 %v30, %v70
  %v72 = vmul.f32 %v31, %v70
  %v73 = vstv %s60
  %v74 = vmul.f32 %v73, %v71
  %v75 = vmul.f32 %v73, %v72
  %v76 = vsub.f32 %v32, %v74
  %v77 = vsub.f32 %v33, %v75
  %v78 = vmul.f32 %v34, %v71
  %v79 = vmul.f32 %v35, %v72
  %v80 = vadd.f32 %v78, %v76
  %v81 = vadd.f32 %v79, %v77
  %s82 = scalar_lea.vmem %s0, 16
  %v83 = vld [vmem:[%s82] sm:$0xff]
  %v84 = vld [vmem:[%s82 + $0x8] sm:$0xff]
  %v85 = vadd.f32 %v83, %v84
  %86 = vadd.xlane.f32.xlu0 %v85
  %v87 = vpop.xlane.xlu0 %86
  %v88 = vrot.slane %v87, 4
  %v89 = vadd.f32 %v87, %v88
  %v90 = vrot.slane %v89, 2
  %v91 = vadd.f32 %v89, %v90
  %v92 = vrot.slane %v91, 1
  %v93 = vadd.f32 %v91, %v92
  %s94 = vtos %v93
  %v95 = vmul.f32 %v83, %v83
  %v96 = vmul.f32 %v84, %v84
  %v97 = vadd.f32 %v95, %v96
  %98 = vadd.xlane.f32.xlu0 %v97
  %v99 = vpop.xlane.xlu0 %98
  %v100 = vrot.slane %v99, 4
  %v101 = vadd.f32 %v99, %v100
  %v102 = vrot.slane %v101, 2
  %v103 = vadd.f32 %v101, %v102
  %v104 = vrot.slane %v103, 1
  %v105 = vadd.f32 %v103, %v104
  %s106 = vtos %v105
  %v107 = vrcp.pop 1024.0
  %s108 = vtos %v107
  %s109 = smul.f32 %s94, %s108
  %v110 = vrcp.pop 1024.0
  %s111 = vtos %v110
  %s112 = smul.f32 %s106, %s111
  %s113 = smul.f32 %s109, %s109
  %s114 = ssub.f32 %s112, %s113
  %s115 = sadd.f32 %s114, 1e-05
  %v116 = vstv %s115
  %v117 = vrsqrt.pop %v116
  %s118 = vtos %v117
  %v119 = vstv %s118
  %v120 = vmul.f32 %v30, %v119
  %v121 = vmul.f32 %v31, %v119
  %v122 = vstv %s109
  %v123 = vmul.f32 %v122, %v120
  %v124 = vmul.f32 %v122, %v121
  %v125 = vsub.f32 %v32, %v123
  %v126 = vsub.f32 %v33, %v124
  %v127 = vmul.f32 %v83, %v120
  %v128 = vmul.f32 %v84, %v121
  %v129 = vadd.f32 %v127, %v125
  %v130 = vadd.f32 %v128, %v126
  %v131 = vld [vmem:[%s3] sm:$0xff]
  %v132 = vld [vmem:[%s3 + $0x8] sm:$0xff]
  %v133 = vld [vmem:[%s3 + $0x10] sm:$0xff]
  %v134 = vld [vmem:[%s3 + $0x18] sm:$0xff]
  %v135 = vld [vmem:[%s3 + $0x20] sm:$0x1]
  %v136 = vld [vmem:[%s3 + $0x28] sm:$0x1]
  %v137 = vld [vmem:[%s3 + $0x30] sm:$0x1]
  %v138 = vld [vmem:[%s3 + $0x38] sm:$0x1]
  %v139 = vld [vmem:[%s4] sm:$0xf]
  %v140 = vld [vmem:[%s5] sm:$0xff]
  %141 = vrot.lane.b32.xlu0 %v80, 17
  %v142 = vpop.permute.xlu0 %141
  %143 = vrot.lane.b32.xlu0 %v81, 17
  %v144 = vpop.permute.xlu0 %143
  %145 = vrot.lane.b32.xlu0 %v129, 17
  %v146 = vpop.permute.xlu0 %145
  %147 = vrot.lane.b32.xlu0 %v130, 17
  %v148 = vpop.permute.xlu0 %147
  %v149 = vlaneseq
  %v150 = vand.u32 %v149, 127
  %vm151 = vcmp.lt.s32.totalorder %v150, 17
  %v152 = vsel %vm151, %v146, %v148
  %v153 = vsel %vm151, %v144, %v146
  %v154 = vsel %vm151, %v142, %v144
  %v155 = vsel %vm151, %v148, %v142
  %v156 = vlaneseq
  %v157 = vshrl.u32 %v156, 7
  %v158 = vsub.s32 0, %v157
  %v159 = vrot.slane %v131, %v158
  %v160 = vlaneseq
  %v161 = vshrl.u32 %v160, 7
  %v162 = vsub.s32 0, %v161
  %v163 = vrot.slane %v132, %v162
  %v164 = vlaneseq
  %v165 = vshrl.u32 %v164, 7
  %v166 = vsub.s32 0, %v165
  %v167 = vrot.slane %v133, %v166
  %v168 = vlaneseq
  %v169 = vshrl.u32 %v168, 7
  %v170 = vsub.s32 0, %v169
  %v171 = vrot.slane %v134, %v170
  %v172 = vmul.f32 %v155, %v159
  %v173 = vmul.f32 %v154, %v163
  %v174 = vmul.f32 %v153, %v167
  %v175 = vmul.f32 %v152, %v171
  %176 = vrot.lane.b32.xlu0 %v80, 16
  %v177 = vpop.permute.xlu0 %176
  %178 = vrot.lane.b32.xlu0 %v81, 16
  %v179 = vpop.permute.xlu0 %178
  %180 = vrot.lane.b32.xlu0 %v129, 16
  %v181 = vpop.permute.xlu0 %180
  %182 = vrot.lane.b32.xlu0 %v130, 16
  %v183 = vpop.permute.xlu0 %182
  %vm184 = vcmp.lt.s32.totalorder %v150, 16
  %v185 = vsel %vm184, %v181, %v183
  %v186 = vsel %vm184, %v179, %v181
  %v187 = vsel %vm184, %v177, %v179
  %v188 = vsel %vm184, %v183, %v177
  %v189 = vlaneseq
  %v190 = vshrl.u32 %v189, 7
  %v191 = vsub.s32 1, %v190
  %v192 = vrot.slane %v131, %v191
  %v193 = vlaneseq
  %v194 = vshrl.u32 %v193, 7
  %v195 = vsub.s32 1, %v194
  %v196 = vrot.slane %v132, %v195
  %v197 = vlaneseq
  %v198 = vshrl.u32 %v197, 7
  %v199 = vsub.s32 1, %v198
  %v200 = vrot.slane %v133, %v199
  %v201 = vlaneseq
  %v202 = vshrl.u32 %v201, 7
  %v203 = vsub.s32 1, %v202
  %v204 = vrot.slane %v134, %v203
  %v205 = vmul.f32 %v188, %v192
  %v206 = vmul.f32 %v187, %v196
  %v207 = vmul.f32 %v186, %v200
  %v208 = vmul.f32 %v185, %v204
  %209 = vrot.lane.b32.xlu0 %v80, 15
  %v210 = vpop.permute.xlu0 %209
  %211 = vrot.lane.b32.xlu0 %v81, 15
  %v212 = vpop.permute.xlu0 %211
  %213 = vrot.lane.b32.xlu0 %v129, 15
  %v214 = vpop.permute.xlu0 %213
  %215 = vrot.lane.b32.xlu0 %v130, 15
  %v216 = vpop.permute.xlu0 %215
  %vm217 = vcmp.lt.s32.totalorder %v150, 15
  %v218 = vsel %vm217, %v214, %v216
  %v219 = vsel %vm217, %v212, %v214
  %v220 = vsel %vm217, %v210, %v212
  %v221 = vsel %vm217, %v216, %v210
  %v222 = vlaneseq
  %v223 = vshrl.u32 %v222, 7
  %v224 = vsub.s32 2, %v223
  %v225 = vrot.slane %v131, %v224
  %v226 = vlaneseq
  %v227 = vshrl.u32 %v226, 7
  %v228 = vsub.s32 2, %v227
  %v229 = vrot.slane %v132, %v228
  %v230 = vlaneseq
  %v231 = vshrl.u32 %v230, 7
  %v232 = vsub.s32 2, %v231
  %v233 = vrot.slane %v133, %v232
  %v234 = vlaneseq
  %v235 = vshrl.u32 %v234, 7
  %v236 = vsub.s32 2, %v235
  %v237 = vrot.slane %v134, %v236
  %v238 = vmul.f32 %v221, %v225
  %v239 = vmul.f32 %v220, %v229
  %v240 = vmul.f32 %v219, %v233
  %v241 = vmul.f32 %v218, %v237
  %242 = vrot.lane.b32.xlu0 %v80, 1
  %v243 = vpop.permute.xlu0 %242
  %244 = vrot.lane.b32.xlu0 %v81, 1
  %v245 = vpop.permute.xlu0 %244
  %246 = vrot.lane.b32.xlu0 %v129, 1
  %v247 = vpop.permute.xlu0 %246
  %248 = vrot.lane.b32.xlu0 %v130, 1
  %v249 = vpop.permute.xlu0 %248
  %vm250 = vcmp.lt.s32.totalorder %v150, 1
  %v251 = vsel %vm250, %v247, %v249
  %v252 = vsel %vm250, %v245, %v247
  %v253 = vsel %vm250, %v243, %v245
  %v254 = vsel %vm250, %v249, %v243
  %v255 = vlaneseq
  %v256 = vshrl.u32 %v255, 7
  %v257 = vsub.s32 3, %v256
  %v258 = vrot.slane %v131, %v257
  %v259 = vlaneseq
  %v260 = vshrl.u32 %v259, 7
  %v261 = vsub.s32 3, %v260
  %v262 = vrot.slane %v132, %v261
  %v263 = vlaneseq
  %v264 = vshrl.u32 %v263, 7
  %v265 = vsub.s32 3, %v264
  %v266 = vrot.slane %v133, %v265
  %v267 = vlaneseq
  %v268 = vshrl.u32 %v267, 7
  %v269 = vsub.s32 3, %v268
  %v270 = vrot.slane %v134, %v269
  %v271 = vmul.f32 %v254, %v258
  %v272 = vmul.f32 %v253, %v262
  %v273 = vmul.f32 %v252, %v266
  %v274 = vmul.f32 %v251, %v270
  %v275 = vlaneseq
  %v276 = vshrl.u32 %v275, 7
  %v277 = vsub.s32 4, %v276
  %v278 = vrot.slane %v131, %v277
  %v279 = vlaneseq
  %v280 = vshrl.u32 %v279, 7
  %v281 = vsub.s32 4, %v280
  %v282 = vrot.slane %v132, %v281
  %v283 = vlaneseq
  %v284 = vshrl.u32 %v283, 7
  %v285 = vsub.s32 4, %v284
  %v286 = vrot.slane %v133, %v285
  %v287 = vlaneseq
  %v288 = vshrl.u32 %v287, 7
  %v289 = vsub.s32 4, %v288
  %v290 = vrot.slane %v134, %v289
  %v291 = vmul.f32 %v80, %v278
  %v292 = vmul.f32 %v81, %v282
  %v293 = vmul.f32 %v129, %v286
  %v294 = vmul.f32 %v130, %v290
  %295 = vrot.lane.b32.xlu0 %v80, 127
  %v296 = vpop.permute.xlu0 %295
  %297 = vrot.lane.b32.xlu0 %v81, 127
  %v298 = vpop.permute.xlu0 %297
  %299 = vrot.lane.b32.xlu0 %v129, 127
  %v300 = vpop.permute.xlu0 %299
  %301 = vrot.lane.b32.xlu0 %v130, 127
  %v302 = vpop.permute.xlu0 %301
  %vm303 = vcmp.lt.s32.totalorder %v150, 127
  %v304 = vsel %vm303, %v300, %v302
  %v305 = vsel %vm303, %v298, %v300
  %v306 = vsel %vm303, %v296, %v298
  %v307 = vsel %vm303, %v302, %v296
  %v308 = vlaneseq
  %v309 = vshrl.u32 %v308, 7
  %v310 = vsub.s32 5, %v309
  %v311 = vrot.slane %v131, %v310
  %v312 = vlaneseq
  %v313 = vshrl.u32 %v312, 7
  %v314 = vsub.s32 5, %v313
  %v315 = vrot.slane %v132, %v314
  %v316 = vlaneseq
  %v317 = vshrl.u32 %v316, 7
  %v318 = vsub.s32 5, %v317
  %v319 = vrot.slane %v133, %v318
  %v320 = vlaneseq
  %v321 = vshrl.u32 %v320, 7
  %v322 = vsub.s32 5, %v321
  %v323 = vrot.slane %v134, %v322
  %v324 = vmul.f32 %v306, %v311
  %v325 = vmul.f32 %v305, %v315
  %v326 = vmul.f32 %v304, %v319
  %v327 = vmul.f32 %v307, %v323
  %328 = vrot.lane.b32.xlu0 %v80, 113
  %v329 = vpop.permute.xlu0 %328
  %330 = vrot.lane.b32.xlu0 %v81, 113
  %v331 = vpop.permute.xlu0 %330
  %332 = vrot.lane.b32.xlu0 %v129, 113
  %v333 = vpop.permute.xlu0 %332
  %334 = vrot.lane.b32.xlu0 %v130, 113
  %v335 = vpop.permute.xlu0 %334
  %vm336 = vcmp.lt.s32.totalorder %v150, 113
  %v337 = vsel %vm336, %v333, %v335
  %v338 = vsel %vm336, %v331, %v333
  %v339 = vsel %vm336, %v329, %v331
  %v340 = vsel %vm336, %v335, %v329
  %v341 = vlaneseq
  %v342 = vshrl.u32 %v341, 7
  %v343 = vsub.s32 6, %v342
  %v344 = vrot.slane %v131, %v343
  %v345 = vlaneseq
  %v346 = vshrl.u32 %v345, 7
  %v347 = vsub.s32 6, %v346
  %v348 = vrot.slane %v132, %v347
  %v349 = vlaneseq
  %v350 = vshrl.u32 %v349, 7
  %v351 = vsub.s32 6, %v350
  %v352 = vrot.slane %v133, %v351
  %v353 = vlaneseq
  %v354 = vshrl.u32 %v353, 7
  %v355 = vsub.s32 6, %v354
  %v356 = vrot.slane %v134, %v355
  %v357 = vmul.f32 %v339, %v344
  %v358 = vmul.f32 %v338, %v348
  %v359 = vmul.f32 %v337, %v352
  %v360 = vmul.f32 %v340, %v356
  %361 = vrot.lane.b32.xlu0 %v80, 112
  %v362 = vpop.permute.xlu0 %361
  %363 = vrot.lane.b32.xlu0 %v81, 112
  %v364 = vpop.permute.xlu0 %363
  %365 = vrot.lane.b32.xlu0 %v129, 112
  %v366 = vpop.permute.xlu0 %365
  %367 = vrot.lane.b32.xlu0 %v130, 112
  %v368 = vpop.permute.xlu0 %367
  %vm369 = vcmp.lt.s32.totalorder %v150, 112
  %v370 = vsel %vm369, %v366, %v368
  %v371 = vsel %vm369, %v364, %v366
  %v372 = vsel %vm369, %v362, %v364
  %v373 = vsel %vm369, %v368, %v362
  %v374 = vlaneseq
  %v375 = vshrl.u32 %v374, 7
  %v376 = vsub.s32 7, %v375
  %v377 = vrot.slane %v131, %v376
  %v378 = vlaneseq
  %v379 = vshrl.u32 %v378, 7
  %v380 = vsub.s32 7, %v379
  %v381 = vrot.slane %v132, %v380
  %v382 = vlaneseq
  %v383 = vshrl.u32 %v382, 7
  %v384 = vsub.s32 7, %v383
  %v385 = vrot.slane %v133, %v384
  %v386 = vlaneseq
  %v387 = vshrl.u32 %v386, 7
  %v388 = vsub.s32 7, %v387
  %v389 = vrot.slane %v134, %v388
  %v390 = vmul.f32 %v372, %v377
  %v391 = vmul.f32 %v371, %v381
  %v392 = vmul.f32 %v370, %v385
  %v393 = vmul.f32 %v373, %v389
  %394 = vrot.lane.b32.xlu0 %v80, 111
  %v395 = vpop.permute.xlu0 %394
  %396 = vrot.lane.b32.xlu0 %v81, 111
  %v397 = vpop.permute.xlu0 %396
  %398 = vrot.lane.b32.xlu0 %v129, 111
  %v399 = vpop.permute.xlu0 %398
  %400 = vrot.lane.b32.xlu0 %v130, 111
  %v401 = vpop.permute.xlu0 %400
  %vm402 = vcmp.lt.s32.totalorder %v150, 111
  %v403 = vsel %vm402, %v399, %v401
  %v404 = vsel %vm402, %v397, %v399
  %v405 = vsel %vm402, %v395, %v397
  %v406 = vsel %vm402, %v401, %v395
  %v407 = vlaneseq
  %v408 = vshrl.u32 %v407, 7
  %v409 = vsub.s32 0, %v408
  %v410 = vrot.slane %v135, %v409
  %v411 = vlaneseq
  %v412 = vshrl.u32 %v411, 7
  %v413 = vsub.s32 0, %v412
  %v414 = vrot.slane %v136, %v413
  %v415 = vlaneseq
  %v416 = vshrl.u32 %v415, 7
  %v417 = vsub.s32 0, %v416
  %v418 = vrot.slane %v137, %v417
  %v419 = vlaneseq
  %v420 = vshrl.u32 %v419, 7
  %v421 = vsub.s32 0, %v420
  %v422 = vrot.slane %v138, %v421
  %v423 = vmul.f32 %v405, %v410
  %v424 = vmul.f32 %v404, %v414
  %v425 = vmul.f32 %v403, %v418
  %v426 = vmul.f32 %v406, %v422
  %v427 = vpack.c.bf16 %v205, %v172
  %v428 = vpack.c.bf16 %v206, %v173
  %v429 = vpack.c.bf16 %v207, %v174
  %v430 = vpack.c.bf16 %v208, %v175
  %v431 = vpack.c.bf16 %v271, %v238
  %v432 = vpack.c.bf16 %v272, %v239
  %v433 = vpack.c.bf16 %v273, %v240
  %v434 = vpack.c.bf16 %v274, %v241
  %v435 = vpack.c.bf16 %v324, %v291
  %v436 = vpack.c.bf16 %v325, %v292
  %v437 = vpack.c.bf16 %v326, %v293
  %v438 = vpack.c.bf16 %v327, %v294
  %v439 = vpack.c.bf16 %v390, %v357
  %v440 = vpack.c.bf16 %v391, %v358
  %v441 = vpack.c.bf16 %v392, %v359
  %v442 = vpack.c.bf16 %v393, %v360
  %v443 = vpack.c.bf16 %v423, %v423
  %v444 = vpack.c.bf16 %v424, %v424
  %v445 = vpack.c.bf16 %v425, %v425
  %v446 = vpack.c.bf16 %v426, %v426
  %448 = vset.pattern.permute.xlu0 0
  %449 = vperm.xlu0 %448, %v140
  %v450 = vpop.permute.xlu0 %449
  %vm452 = vcmask 588800
  %v454 = vsel %vm452, %v139, 0
  %vm456 = vcmask 1043456
  %v458 = vsel %vm456, %v443, 0
  %v461 = vsel %vm456, %v444, 0
  %v464 = vsel %vm456, %v445, 0
  %v467 = vsel %vm456, %v446, 0
  %469 = vmatprep.subr.bf16.mxu0 0
  %470 = vmatpush1.bf16.msra.mxu0 0
  %471 = vmatprep.subr.bf16.mxu0 0
  %472 = vmatpush1.bf16.msra.mxu0 0
  %473 = vmatprep.subr.bf16.mxu0 0
  %474 = vmatpush1.bf16.msra.mxu0 0
  %475 = vmatprep.subr.bf16.mxu0 %v461
  %476 = vmatpush1.bf16.msra.mxu0 %v458
  %477 = vmatprep.subr.bf16.mxu0 %v440
  %478 = vmatpush1.bf16.msra.mxu0 %v439
  %479 = vmatprep.subr.bf16.mxu0 %v436
  %480 = vmatpush1.bf16.msra.mxu0 %v435
  %481 = vmatprep.subr.bf16.mxu0 %v432
  %482 = vmatpush1.bf16.msra.mxu0 %v431
  %483 = vmatprep.subr.bf16.mxu0 %v428
  %484 = vmatpush1.bf16.msra.mxu0 %v427
  %485 = vmatprep.subr.bf16.mxu0 0
  %486 = vmatpush2.bf16.msra.mxu0 0
  %487 = vmatprep.subr.bf16.mxu0 0
  %488 = vmatpush2.bf16.msra.mxu0 0
  %489 = vmatprep.subr.bf16.mxu0 0
  %490 = vmatpush2.bf16.msra.mxu0 0
  %491 = vmatprep.subr.bf16.mxu0 0
  %492 = vmatpush2.bf16.msra.mxu0 0
  %493 = vmatprep.subr.bf16.mxu0 0
  %494 = vmatpush2.bf16.msra.mxu0 0
  %495 = vmatprep.subr.bf16.mxu0 0
  %496 = vmatpush2.bf16.msra.mxu0 0
  %497 = vmatprep.subr.bf16.mxu0 0
  %498 = vmatpush2.bf16.msra.mxu0 0
  %499 = vmatprep.subr.bf16.mxu0 0
  %500 = vmatpush2.bf16.msra.mxu0 0
  %501 = vmatprep.mubr.bf16.mxu0 0
  %502 = vmatmul.mubr.bf16.gmra.mxu0 %v454
  %v503 = vpop.f32.mrf.mxu0
  %v504 = vadd.f32 %v450, %v503
  %v505 = vpop.f32.mrf.mxu0
  %v506 = vadd.f32 %v450, %v505
  %v507 = vpop.f32.mrf.mxu0
  %v508 = vpop.f32.mrf.mxu0
  %509 = vdwg.mxu0
  %510 = vmatprep.subr.bf16.mxu0 0
  %511 = vmatpush1.bf16.msra.mxu0 0
  %512 = vmatprep.subr.bf16.mxu0 0
  %513 = vmatpush1.bf16.msra.mxu0 0
  %514 = vmatprep.subr.bf16.mxu0 0
  %515 = vmatpush1.bf16.msra.mxu0 0
  %516 = vmatprep.subr.bf16.mxu0 %v467
  %517 = vmatpush1.bf16.msra.mxu0 %v464
  %518 = vmatprep.subr.bf16.mxu0 %v442
  %519 = vmatpush1.bf16.msra.mxu0 %v441
  %520 = vmatprep.subr.bf16.mxu0 %v438
  %521 = vmatpush1.bf16.msra.mxu0 %v437
  %522 = vmatprep.subr.bf16.mxu0 %v434
  %523 = vmatpush1.bf16.msra.mxu0 %v433
  %524 = vmatprep.subr.bf16.mxu0 %v430
  %525 = vmatpush1.bf16.msra.mxu0 %v429
  %526 = vmatprep.subr.bf16.mxu0 0
  %527 = vmatpush2.bf16.msra.mxu0 0
  %528 = vmatprep.subr.bf16.mxu0 0
  %529 = vmatpush2.bf16.msra.mxu0 0
  %530 = vmatprep.subr.bf16.mxu0 0
  %531 = vmatpush2.bf16.msra.mxu0 0
  %532 = vmatprep.subr.bf16.mxu0 0
  %533 = vmatpush2.bf16.msra.mxu0 0
  %534 = vmatprep.subr.bf16.mxu0 0
  %535 = vmatpush2.bf16.msra.mxu0 0
  %536 = vmatprep.subr.bf16.mxu0 0
  %537 = vmatpush2.bf16.msra.mxu0 0
  %538 = vmatprep.subr.bf16.mxu0 0
  %539 = vmatpush2.bf16.msra.mxu0 0
  %540 = vmatprep.subr.bf16.mxu0 0
  %541 = vmatpush2.bf16.msra.mxu0 0
  %542 = vmatprep.mubr.bf16.mxu0 0
  %543 = vmatmul.mubr.bf16.gmra.mxu0 %v454
  %v544 = vpop.f32.mrf.mxu0
  %v545 = vadd.f32 %v450, %v544
  %v546 = vpop.f32.mrf.mxu0
  %v547 = vadd.f32 %v450, %v546
  %v548 = vpop.f32.mrf.mxu0
  %v549 = vpop.f32.mrf.mxu0
  %550 = vdwg.mxu0
  %v551 = vxor.u32 %v504, 2147483648
  %v552 = vxor.u32 %v506, 2147483648
  %v553 = vxor.u32 %v545, 2147483648
  %v554 = vxor.u32 %v547, 2147483648
  %v555 = vmul.f32 %v551, 1.442695
  %v556 = vpow.pop %v555
  %v557 = vmul.f32 %v552, 1.442695
  %v558 = vpow.pop %v557
  %v559 = vmul.f32 %v553, 1.442695
  %v560 = vpow.pop %v559
  %v561 = vmul.f32 %v554, 1.442695
  %v562 = vpow.pop %v561
  %v563 = vadd.f32 %v556, 1.0
  %v564 = vadd.f32 %v558, 1.0
  %v565 = vadd.f32 %v560, 1.0
  %v566 = vadd.f32 %v562, 1.0
  %v567 = vrcp.pop %v563
  %v568 = vmul.f32 1.0, %v567
  %v569 = vrcp.pop %v564
  %v570 = vmul.f32 1.0, %v569
  %v571 = vrcp.pop %v565
  %v572 = vmul.f32 1.0, %v571
  %v573 = vrcp.pop %v566
  %v574 = vmul.f32 1.0, %v573
  %v575 = vmul.f32 %v504, %v568
  %v576 = vmul.f32 %v506, %v570
  %v577 = vmul.f32 %v545, %v572
  %v578 = vmul.f32 %v547, %v574
  %v579 = vld [vmem:[%s6] sm:$0xf]
  %v580 = vld [vmem:[%s7] sm:$0xff]
  %581 = vrot.lane.b32.xlu0 %v575, 17
  %v582 = vpop.permute.xlu0 %581
  %583 = vrot.lane.b32.xlu0 %v576, 17
  %v584 = vpop.permute.xlu0 %583
  %585 = vrot.lane.b32.xlu0 %v577, 17
  %v586 = vpop.permute.xlu0 %585
  %587 = vrot.lane.b32.xlu0 %v578, 17
  %v588 = vpop.permute.xlu0 %587
  %v589 = vsel %vm151, %v586, %v588
  %v590 = vsel %vm151, %v584, %v586
  %v591 = vsel %vm151, %v582, %v584
  %v592 = vsel %vm151, %v588, %v582
  %v593 = vmul.f32 %v592, %v159
  %v594 = vmul.f32 %v591, %v163
  %v595 = vmul.f32 %v590, %v167
  %v596 = vmul.f32 %v589, %v171
  %597 = vrot.lane.b32.xlu0 %v575, 16
  %v598 = vpop.permute.xlu0 %597
  %599 = vrot.lane.b32.xlu0 %v576, 16
  %v600 = vpop.permute.xlu0 %599
  %601 = vrot.lane.b32.xlu0 %v577, 16
  %v602 = vpop.permute.xlu0 %601
  %603 = vrot.lane.b32.xlu0 %v578, 16
  %v604 = vpop.permute.xlu0 %603
  %v605 = vsel %vm184, %v602, %v604
  %v606 = vsel %vm184, %v600, %v602
  %v607 = vsel %vm184, %v598, %v600
  %v608 = vsel %vm184, %v604, %v598
  %v609 = vmul.f32 %v608, %v192
  %v610 = vmul.f32 %v607, %v196
  %v611 = vmul.f32 %v606, %v200
  %v612 = vmul.f32 %v605, %v204
  %613 = vrot.lane.b32.xlu0 %v575, 15
  %v614 = vpop.permute.xlu0 %613
  %615 = vrot.lane.b32.xlu0 %v576, 15
  %v616 = vpop.permute.xlu0 %615
  %617 = vrot.lane.b32.xlu0 %v577, 15
  %v618 = vpop.permute.xlu0 %617
  %619 = vrot.lane.b32.xlu0 %v578, 15
  %v620 = vpop.permute.xlu0 %619
  %v621 = vsel %vm217, %v618, %v620
  %v622 = vsel %vm217, %v616, %v618
  %v623 = vsel %vm217, %v614, %v616
  %v624 = vsel %vm217, %v620, %v614
  %v625 = vmul.f32 %v624, %v225
  %v626 = vmul.f32 %v623, %v229
  %v627 = vmul.f32 %v622, %v233
  %v628 = vmul.f32 %v621, %v237
  %629 = vrot.lane.b32.xlu0 %v575, 1
  %v630 = vpop.permute.xlu0 %629
  %631 = vrot.lane.b32.xlu0 %v576, 1
  %v632 = vpop.permute.xlu0 %631
  %633 = vrot.lane.b32.xlu0 %v577, 1
  %v634 = vpop.permute.xlu0 %633
  %635 = vrot.lane.b32.xlu0 %v578, 1
  %v636 = vpop.permute.xlu0 %635
  %v637 = vsel %vm250, %v634, %v636
  %v638 = vsel %vm250, %v632, %v634
  %v639 = vsel %vm250, %v630, %v632
  %v640 = vsel %vm250, %v636, %v630
  %v641 = vmul.f32 %v640, %v258
  %v642 = vmul.f32 %v639, %v262
  %v643 = vmul.f32 %v638, %v266
  %v644 = vmul.f32 %v637, %v270
  %v645 = vmul.f32 %v575, %v278
  %v646 = vmul.f32 %v576, %v282
  %v647 = vmul.f32 %v577, %v286
  %v648 = vmul.f32 %v578, %v290
  %649 = vrot.lane.b32.xlu0 %v575, 127
  %v650 = vpop.permute.xlu0 %649
  %651 = vrot.lane.b32.xlu0 %v576, 127
  %v652 = vpop.permute.xlu0 %651
  %653 = vrot.lane.b32.xlu0 %v577, 127
  %v654 = vpop.permute.xlu0 %653
  %655 = vrot.lane.b32.xlu0 %v578, 127
  %v656 = vpop.permute.xlu0 %655
  %v657 = vsel %vm303, %v654, %v656
  %v658 = vsel %vm303, %v652, %v654
  %v659 = vsel %vm303, %v650, %v652
  %v660 = vsel %vm303, %v656, %v650
  %v661 = vmul.f32 %v659, %v311
  %v662 = vmul.f32 %v658, %v315
  %v663 = vmul.f32 %v657, %v319
  %v664 = vmul.f32 %v660, %v323
  %665 = vrot.lane.b32.xlu0 %v575, 113
  %v666 = vpop.permute.xlu0 %665
  %667 = vrot.lane.b32.xlu0 %v576, 113
  %v668 = vpop.permute.xlu0 %667
  %669 = vrot.lane.b32.xlu0 %v577, 113
  %v670 = vpop.permute.xlu0 %669
  %671 = vrot.lane.b32.xlu0 %v578, 113
  %v672 = vpop.permute.xlu0 %671
  %v673 = vsel %vm336, %v670, %v672
  %v674 = vsel %vm336, %v668, %v670
  %v675 = vsel %vm336, %v666, %v668
  %v676 = vsel %vm336, %v672, %v666
  %v677 = vmul.f32 %v675, %v344
  %v678 = vmul.f32 %v674, %v348
  %v679 = vmul.f32 %v673, %v352
  %v680 = vmul.f32 %v676, %v356
  %681 = vrot.lane.b32.xlu0 %v575, 112
  %v682 = vpop.permute.xlu0 %681
  %683 = vrot.lane.b32.xlu0 %v576, 112
  %v684 = vpop.permute.xlu0 %683
  %685 = vrot.lane.b32.xlu0 %v577, 112
  %v686 = vpop.permute.xlu0 %685
  %687 = vrot.lane.b32.xlu0 %v578, 112
  %v688 = vpop.permute.xlu0 %687
  %v689 = vsel %vm369, %v686, %v688
  %v690 = vsel %vm369, %v684, %v686
  %v691 = vsel %vm369, %v682, %v684
  %v692 = vsel %vm369, %v688, %v682
  %v693 = vmul.f32 %v691, %v377
  %v694 = vmul.f32 %v690, %v381
  %v695 = vmul.f32 %v689, %v385
  %v696 = vmul.f32 %v692, %v389
  %697 = vrot.lane.b32.xlu0 %v575, 111
  %v698 = vpop.permute.xlu0 %697
  %699 = vrot.lane.b32.xlu0 %v576, 111
  %v700 = vpop.permute.xlu0 %699
  %701 = vrot.lane.b32.xlu0 %v577, 111
  %v702 = vpop.permute.xlu0 %701
  %703 = vrot.lane.b32.xlu0 %v578, 111
  %v704 = vpop.permute.xlu0 %703
  %v705 = vsel %vm402, %v702, %v704
  %v706 = vsel %vm402, %v700, %v702
  %v707 = vsel %vm402, %v698, %v700
  %v708 = vsel %vm402, %v704, %v698
  %v709 = vmul.f32 %v707, %v410
  %v710 = vmul.f32 %v706, %v414
  %v711 = vmul.f32 %v705, %v418
  %v712 = vmul.f32 %v708, %v422
  %v713 = vpack.c.bf16 %v609, %v593
  %v714 = vpack.c.bf16 %v610, %v594
  %v715 = vpack.c.bf16 %v611, %v595
  %v716 = vpack.c.bf16 %v612, %v596
  %v717 = vpack.c.bf16 %v641, %v625
  %v718 = vpack.c.bf16 %v642, %v626
  %v719 = vpack.c.bf16 %v643, %v627
  %v720 = vpack.c.bf16 %v644, %v628
  %v721 = vpack.c.bf16 %v661, %v645
  %v722 = vpack.c.bf16 %v662, %v646
  %v723 = vpack.c.bf16 %v663, %v647
  %v724 = vpack.c.bf16 %v664, %v648
  %v725 = vpack.c.bf16 %v693, %v677
  %v726 = vpack.c.bf16 %v694, %v678
  %v727 = vpack.c.bf16 %v695, %v679
  %v728 = vpack.c.bf16 %v696, %v680
  %v729 = vpack.c.bf16 %v709, %v709
  %v730 = vpack.c.bf16 %v710, %v710
  %v731 = vpack.c.bf16 %v711, %v711
  %v732 = vpack.c.bf16 %v712, %v712
  %734 = vset.pattern.permute.xlu0 0
  %735 = vperm.xlu0 %734, %v580
  %v736 = vpop.permute.xlu0 %735
  %v739 = vsel %vm452, %v579, 0
  %v742 = vsel %vm456, %v729, 0
  %v745 = vsel %vm456, %v730, 0
  %v748 = vsel %vm456, %v731, 0
  %v751 = vsel %vm456, %v732, 0
  %753 = vmatprep.subr.bf16.mxu0 0
  %754 = vmatpush1.bf16.msra.mxu0 0
  %755 = vmatprep.subr.bf16.mxu0 0
  %756 = vmatpush1.bf16.msra.mxu0 0
  %757 = vmatprep.subr.bf16.mxu0 0
  %758 = vmatpush1.bf16.msra.mxu0 0
  %759 = vmatprep.subr.bf16.mxu0 %v745
  %760 = vmatpush1.bf16.msra.mxu0 %v742
  %761 = vmatprep.subr.bf16.mxu0 %v726
  %762 = vmatpush1.bf16.msra.mxu0 %v725
  %763 = vmatprep.subr.bf16.mxu0 %v722
  %764 = vmatpush1.bf16.msra.mxu0 %v721
  %765 = vmatprep.subr.bf16.mxu0 %v718
  %766 = vmatpush1.bf16.msra.mxu0 %v717
  %767 = vmatprep.subr.bf16.mxu0 %v714
  %768 = vmatpush1.bf16.msra.mxu0 %v713
  %769 = vmatprep.subr.bf16.mxu0 0
  %770 = vmatpush2.bf16.msra.mxu0 0
  %771 = vmatprep.subr.bf16.mxu0 0
  %772 = vmatpush2.bf16.msra.mxu0 0
  %773 = vmatprep.subr.bf16.mxu0 0
  %774 = vmatpush2.bf16.msra.mxu0 0
  %775 = vmatprep.subr.bf16.mxu0 0
  %776 = vmatpush2.bf16.msra.mxu0 0
  %777 = vmatprep.subr.bf16.mxu0 0
  %778 = vmatpush2.bf16.msra.mxu0 0
  %779 = vmatprep.subr.bf16.mxu0 0
  %780 = vmatpush2.bf16.msra.mxu0 0
  %781 = vmatprep.subr.bf16.mxu0 0
  %782 = vmatpush2.bf16.msra.mxu0 0
  %783 = vmatprep.subr.bf16.mxu0 0
  %784 = vmatpush2.bf16.msra.mxu0 0
  %785 = vmatprep.mubr.bf16.mxu0 0
  %786 = vmatmul.mubr.bf16.gmra.mxu0 %v739
  %v787 = vpop.f32.mrf.mxu0
  %v788 = vadd.f32 %v736, %v787
  %v789 = vpop.f32.mrf.mxu0
  %v790 = vadd.f32 %v736, %v789
  %v791 = vpop.f32.mrf.mxu0
  %v792 = vpop.f32.mrf.mxu0
  %793 = vdwg.mxu0
  %794 = vmatprep.subr.bf16.mxu0 0
  %795 = vmatpush1.bf16.msra.mxu0 0
  %796 = vmatprep.subr.bf16.mxu0 0
  %797 = vmatpush1.bf16.msra.mxu0 0
  %798 = vmatprep.subr.bf16.mxu0 0
  %799 = vmatpush1.bf16.msra.mxu0 0
  %800 = vmatprep.subr.bf16.mxu0 %v751
  %801 = vmatpush1.bf16.msra.mxu0 %v748
  %802 = vmatprep.subr.bf16.mxu0 %v728
  %803 = vmatpush1.bf16.msra.mxu0 %v727
  %804 = vmatprep.subr.bf16.mxu0 %v724
  %805 = vmatpush1.bf16.msra.mxu0 %v723
  %806 = vmatprep.subr.bf16.mxu0 %v720
  %807 = vmatpush1.bf16.msra.mxu0 %v719
  %808 = vmatprep.subr.bf16.mxu0 %v716
  %809 = vmatpush1.bf16.msra.mxu0 %v715
  %810 = vmatprep.subr.bf16.mxu0 0
  %811 = vmatpush2.bf16.msra.mxu0 0
  %812 = vmatprep.subr.bf16.mxu0 0
  %813 = vmatpush2.bf16.msra.mxu0 0
  %814 = vmatprep.subr.bf16.mxu0 0
  %815 = vmatpush2.bf16.msra.mxu0 0
  %816 = vmatprep.subr.bf16.mxu0 0
  %817 = vmatpush2.bf16.msra.mxu0 0
  %818 = vmatprep.subr.bf16.mxu0 0
  %819 = vmatpush2.bf16.msra.mxu0 0
  %820 = vmatprep.subr.bf16.mxu0 0
  %821 = vmatpush2.bf16.msra.mxu0 0
  %822 = vmatprep.subr.bf16.mxu0 0
  %823 = vmatpush2.bf16.msra.mxu0 0
  %824 = vmatprep.subr.bf16.mxu0 0
  %825 = vmatpush2.bf16.msra.mxu0 0
  %826 = vmatprep.mubr.bf16.mxu0 0
  %827 = vmatmul.mubr.bf16.gmra.mxu0 %v739
  %v828 = vpop.f32.mrf.mxu0
  %v829 = vadd.f32 %v736, %v828
  %v830 = vpop.f32.mrf.mxu0
  %v831 = vadd.f32 %v736, %v830
  %v832 = vpop.f32.mrf.mxu0
  %v833 = vpop.f32.mrf.mxu0
  %834 = vdwg.mxu0
  %v835 = vxor.u32 %v788, 2147483648
  %v836 = vxor.u32 %v790, 2147483648
  %v837 = vxor.u32 %v829, 2147483648
  %v838 = vxor.u32 %v831, 2147483648
  %v839 = vmul.f32 %v835, 1.442695
  %v840 = vpow.pop %v839
  %v841 = vmul.f32 %v836, 1.442695
  %v842 = vpow.pop %v841
  %v843 = vmul.f32 %v837, 1.442695
  %v844 = vpow.pop %v843
  %v845 = vmul.f32 %v838, 1.442695
  %v846 = vpow.pop %v845
  %v847 = vadd.f32 %v840, 1.0
  %v848 = vadd.f32 %v842, 1.0
  %v849 = vadd.f32 %v844, 1.0
  %v850 = vadd.f32 %v846, 1.0
  %v851 = vrcp.pop %v847
  %v852 = vmul.f32 1.0, %v851
  %v853 = vrcp.pop %v848
  %v854 = vmul.f32 1.0, %v853
  %v855 = vrcp.pop %v849
  %v856 = vmul.f32 1.0, %v855
  %v857 = vrcp.pop %v850
  %v858 = vmul.f32 1.0, %v857
  %v859 = vmul.f32 %v788, %v852
  %v860 = vmul.f32 %v790, %v854
  %v861 = vmul.f32 %v829, %v856
  %v862 = vmul.f32 %v831, %v858
  %863 = vst [vmem:[%s8] sm:$0xff] %v859
  %864 = vst [vmem:[%s8 + $0x8] sm:$0xff] %v860
  %s865 = scalar_lea.vmem %s8, 16
  %866 = vst [vmem:[%s865] sm:$0xff] %v861
  %867 = vst [vmem:[%s865 + $0x8] sm:$0xff] %v862
  // Predicated region
  $region34: #{my_block_forward.1} parent=0 // pred_check
    _
  $region35: #{my_block_forward.1} parent=0 // pred_check_branch
    %869 = sbr.rel (0) target = $region37
  $region36: #{my_block_forward.1} parent=0 // pred_region
    _
  $region37: #{my_block_forward.1} parent=0 // pred_fallthru
    _
  // Predicated region
  $region38: #{my_block_forward.1} parent=0 // pred_check
    _
  $region39: #{my_block_forward.1} parent=0 // pred_check_branch
    %871 = sbr.rel (0) target = $region41
  $region40: #{my_block_forward.1} parent=0 // pred_region
    _
  $region41: #{my_block_forward.1} parent=0 // pred_fallthru
    _

</llo_original>
